<compile_context>
chip_gen: v6e
topology: v6e:2x2x1
jax: 0.10.0
libtpu: 0.0.40
codegen_flags: <defaults>
</compile_context>

<pallas_src>
import functools

import jax
import jax.numpy as jnp
from jax.experimental import pallas as pl
from jax.experimental.pallas import tpu as pltpu


# ---------------------------------------------------------------------------
# VMEM sizing helpers
# ---------------------------------------------------------------------------

def _vmem_capacity_bytes():
    """Per-core VMEM capacity; conservative v7x value if the query fails."""
    try:
        info = pltpu.get_tpu_info()
        cap = int(getattr(info, "vmem_capacity_bytes", 64 << 20))
    except Exception:
        cap = 64 << 20
    return max(cap, 64 << 20)


def _step_bytes_per_elem(itemsize):
    # Per-element VMEM footprint of one grid step:
    #   2x double-buffered x input + 2x double-buffered output (itemsize each)
    #   + one f32 working temp of the tile (the widened / centered copy).
    return 4 * itemsize + max(itemsize, 4)


def _default_step_budget(vmem_cap):
    # ~1/3 of per-core VMEM for the per-step working set:
    #   v7x (64 MiB)      -> ~21 MiB step  (~4 MiB x block for f32)
    #   v5e/v6e (128 MiB) ->  36 MiB step  (~7 MiB x block for f32)
    return min(vmem_cap // 3, 36 << 20)


def _vmem_limit_bytes(footprint, vmem_cap):
    # Scoped-VMEM limit derived from the actual per-step footprint plus
    # headroom for compiler-internal scratch; never more than 5/8 of physical.
    return int(min(max(footprint + (4 << 20), 16 << 20), (vmem_cap * 5) // 8))


def _pick_row_tile(rows, hw, itemsize, step_budget, *, min_grid_steps=2):
    """Largest sublane-aligned row tile dividing `rows` whose full per-step
    footprint fits `step_budget`.  Prefers an EVEN grid-step count so the
    'parallel' axis splits evenly across v7x's two TensorCores."""
    bytes_per_row = hw * _step_bytes_per_elem(itemsize)
    max_rows = max(8, (step_budget // bytes_per_row) // 8 * 8)
    cands = [d for d in range(8, rows + 1, 8) if rows % d == 0]
    fitting = [d for d in cands if d <= max_rows] or [min(cands)]
    stepful = [d for d in fitting if rows // d >= min_grid_steps]
    if stepful:
        even = [d for d in stepful if (rows // d) % 2 == 0]
        return max(even) if even else max(stepful)
    return max(fitting)


def _pick_chunk_tiles(rows, hw_padded, itemsize, step_budget):
    """Row/lane tile sizes for the two-pass (HW-chunked) path."""
    bpe = _step_bytes_per_elem(itemsize)
    thw = 128
    for d in range(128, hw_padded + 1, 128):
        if hw_padded % d == 0 and 8 * d * bpe <= step_budget:
            thw = max(thw, d)
    max_rows = max(8, (step_budget // (thw * bpe)) // 8 * 8)
    tr_cands = [d for d in range(8, rows + 1, 8) if rows % d == 0 and d <= max_rows]
    tr = max(tr_cands) if tr_cands else 8
    return tr, thw


# ---------------------------------------------------------------------------
# Kernels
# ---------------------------------------------------------------------------

def _adain_kernel(gb_ref, x_ref, o_ref, *, eps, inv_hw):
    # gb_ref : (TR, 2)   col 0 = gamma, col 1 = beta (style FC done in XLA)
    # x_ref  : (TR, HW)  rows = flattened (n, c) pairs, lanes = spatial
    # o_ref  : (TR, HW)
    s1 = jnp.sum(x_ref[...].astype(jnp.float32), axis=-1, keepdims=True)
    mean = s1 * inv_hw                                       # (TR, 1)

    # Centered second moment: avoids E[x^2]-mean^2 cancellation.  The tile is
    # already VMEM-resident so this second sweep is free VPU/XLU work on an
    # HBM-bound kernel; re-reading x_ref keeps only one full-tile f32 temp.
    d = x_ref[...].astype(jnp.float32) - mean                # (TR, HW) f32
    var = jnp.sum(d * d, axis=-1, keepdims=True) * inv_hw    # biased, like InstanceNorm2d
    inv_std = jax.lax.rsqrt(var + eps)                       # (TR, 1)

    gb = gb_ref[...].astype(jnp.float32)                     # (TR, 2)
    scale = (1.0 + gb[:, 0:1]) * inv_std
    # (1+gamma) * (x-mean) * inv_std + beta
    o_ref[...] = (d * scale + gb[:, 1:2]).astype(o_ref.dtype)


def _stats_kernel(x_ref, st_ref, s1_ref, s2_ref, *, inv_hw):
    # Pass 1 of the large-HW path: accumulate per-row sum / sum-of-squares
    # across HW chunks; write (mean, var) on the last chunk.
    j = pl.program_id(1)

    @pl.when(j == 0)
    def _():
        s1_ref[...] = jnp.zeros_like(s1_ref)
        s2_ref[...] = jnp.zeros_like(s2_ref)

    x = x_ref[...].astype(jnp.float32)
    s1_ref[...] += jnp.sum(x, axis=-1, keepdims=True)
    s2_ref[...] += jnp.sum(x * x, axis=-1, keepdims=True)

    @pl.when(j == pl.num_programs(1) - 1)
    def _():
        mean = s1_ref[...] * inv_hw
        var = jnp.maximum(s2_ref[...] * inv_hw - mean * mean, 0.0)
        st_ref[...] = jnp.concatenate([mean, var], axis=-1)


def _normalize_kernel(gb_ref, st_ref, x_ref, o_ref, *, eps):
    # Pass 2 of the large-HW path: fused normalize + affine per HW chunk.
    gb = gb_ref[...].astype(jnp.float32)                     # (TR, 2)
    mean = st_ref[:, 0:1]
    inv_std = jax.lax.rsqrt(st_ref[:, 1:2] + eps)
    scale = (1.0 + gb[:, 0:1]) * inv_std
    shift = gb[:, 1:2] - mean * scale
    o_ref[...] = (x_ref[...].astype(jnp.float32) * scale + shift).astype(o_ref.dtype)


# ---------------------------------------------------------------------------
# Drivers
# ---------------------------------------------------------------------------

def _adain_two_pass(gb, x, rows, hw, out_dtype, eps, step_budget, vmem_cap):
    """HW-chunked two-pass scheme for feature maps too large for one row-tile."""
    itemsize = jnp.dtype(x.dtype).itemsize
    # Pad HW to a multiple of 128 so chunks are lane-dense.  Zero padding does
    # not perturb the (sum, sum-of-squares) statistics because we divide by
    # the true HW; padded lanes are sliced off after the call.
    hw_p = ((hw + 127) // 128) * 128
    if hw_p != hw:
        x = jnp.pad(x, ((0, 0), (0, hw_p - hw)))

    tr, thw = _pick_chunk_tiles(rows, hw_p, itemsize, step_budget)
    grid = (rows // tr, hw_p // thw)
    vmem_limit = _vmem_limit_bytes(tr * thw * _step_bytes_per_elem(itemsize), vmem_cap)

    stats = pl.pallas_call(
        functools.partial(_stats_kernel, inv_hw=1.0 / hw),
        out_shape=jax.ShapeDtypeStruct((rows, 2), jnp.float32),
        grid_spec=pltpu.PrefetchScalarGridSpec(
            num_scalar_prefetch=0,
            grid=grid,
            in_specs=[pl.BlockSpec((tr, thw), lambda i, j: (i, j))],
            out_specs=pl.BlockSpec((tr, 2), lambda i, j: (i, 0)),
            scratch_shapes=[pltpu.VMEM((tr, 1), jnp.float32),
                            pltpu.VMEM((tr, 1), jnp.float32)],
        ),
        compiler_params=pltpu.CompilerParams(
            dimension_semantics=("parallel", "arbitrary"),
            vmem_limit_bytes=vmem_limit,
        ),
    )(x)

    out = pl.pallas_call(
        functools.partial(_normalize_kernel, eps=eps),
        out_shape=jax.ShapeDtypeStruct((rows, hw_p), out_dtype),
        grid_spec=pltpu.PrefetchScalarGridSpec(
            num_scalar_prefetch=0,
            grid=grid,
            in_specs=[pl.BlockSpec((tr, 2), lambda i, j: (i, 0)),
                      pl.BlockSpec((tr, 2), lambda i, j: (i, 0)),
                      pl.BlockSpec((tr, thw), lambda i, j: (i, j))],
            out_specs=pl.BlockSpec((tr, thw), lambda i, j: (i, j)),
        ),
        compiler_params=pltpu.CompilerParams(
            dimension_semantics=("parallel", "parallel"),
            vmem_limit_bytes=vmem_limit,
        ),
    )(gb, stats, x)

    return out[:, :hw] if hw_p != hw else out


def adain_forward(x_nchw, s, fc_w, fc_b, *, eps=1e-5, step_vmem_budget=None):
    """AdaIN forward. x_nchw:(N,C,H,W), s:(N,S), fc_w:(2C,S), fc_b:(2C,)."""
    N, C, H, W = x_nchw.shape
    HW = H * W
    rows = N * C
    itemsize = jnp.dtype(x_nchw.dtype).itemsize

    vmem_cap = _vmem_capacity_bytes()
    if step_vmem_budget is None:
        step_vmem_budget = _default_step_budget(vmem_cap)

    # Style FC hoisted to one XLA matmul (MXU); gamma/beta packed into a
    # single (rows, 2) operand so the kernel sees one small DMA per step.
    h = (s.astype(jnp.float32) @ fc_w.astype(jnp.float32).T
         + fc_b.astype(jnp.float32))                          # (N, 2C)
    gb = jnp.stack([h[:, :C].reshape(rows),                   # gamma
                    h[:, C:].reshape(rows)], axis=-1)         # beta -> (rows, 2)

    # Native-layout flatten: NCHW -> (N*C, HW). Pure reshape, no HBM traffic.
    x = x_nchw.reshape(rows, HW)

    # Sublane-align the row count (pad with zero rows; sliced off afterwards).
    rows_p = ((rows + 7) // 8) * 8
    if rows_p != rows:
        x = jnp.pad(x, ((0, rows_p - rows), (0, 0)))
        gb = jnp.pad(gb, ((0, rows_p - rows), (0, 0)))

    bytes_per_row = HW * _step_bytes_per_elem(itemsize)

    if 8 * bytes_per_row > step_vmem_budget:
        # Large feature maps: even an 8-row tile exceeds the per-step budget.
        out = _adain_two_pass(gb, x, rows_p, HW, x_nchw.dtype, eps,
                              step_vmem_budget, vmem_cap)
    else:
        tr = _pick_row_tile(rows_p, HW, itemsize, step_vmem_budget)
        vmem_limit = _vmem_limit_bytes(tr * bytes_per_row, vmem_cap)
        # TODO(synk): if HW is not a 128-multiple (e.g. 7x7 / 14x14 maps) the
        # lane axis is mask-padded on store; pad HW once in HBM when such
        # shapes are hot to keep stores lane-dense.
        out = pl.pallas_call(
            functools.partial(_adain_kernel, eps=eps, inv_hw=1.0 / HW),
            out_shape=jax.ShapeDtypeStruct((rows_p, HW), x_nchw.dtype),
            grid_spec=pltpu.PrefetchScalarGridSpec(
                num_scalar_prefetch=0,
                grid=(rows_p // tr,),
                in_specs=[pl.BlockSpec((tr, 2), lambda i: (i, 0)),    # gamma|beta
                          pl.BlockSpec((tr, HW), lambda i: (i, 0))],  # x
                out_specs=pl.BlockSpec((tr, HW), lambda i: (i, 0)),
            ),
            compiler_params=pltpu.CompilerParams(
                dimension_semantics=("parallel",),
                vmem_limit_bytes=vmem_limit,
            ),
        )(gb, x)

    if rows_p != rows:
        out = out[:rows]
    return out.reshape(N, C, H, W)


def adain_reference(x, s, fc_w, fc_b, *, eps=1e-5):
    """Pure-JAX reference matching the PyTorch module semantics."""
    N, C, H, W = x.shape
    h = s @ fc_w.T + fc_b                                     # (N, 2C)
    gamma = h[:, :C][:, :, None, None]
    beta = h[:, C:][:, :, None, None]
    mean = jnp.mean(x, axis=(2, 3), keepdims=True)
    var = jnp.var(x, axis=(2, 3), keepdims=True)              # biased, like InstanceNorm2d
    xn = (x - mean) / jnp.sqrt(var + eps)
    return (1.0 + gamma) * xn + beta


if __name__ == "__main__":
    # Small shapes consistent with the module: batch=2, channels=4,
    # spatial=16x16, style_dim=8.
    N, C, H, W = 2, 4, 16, 16
    style_dim = 8

    key = jax.random.PRNGKey(0)
    kx, ks, kw, kb = jax.random.split(key, 4)

    x = jax.random.normal(kx, (N, C, H, W), dtype=jnp.float32)
    s = jax.random.normal(ks, (N, style_dim), dtype=jnp.float32)

    # Deterministic synthetic fc parameters (nn.Linear(style_dim, 2*C)).
    bound = 1.0 / (style_dim ** 0.5)
    fc_w = jax.random.uniform(kw, (2 * C, style_dim), dtype=jnp.float32,
                              minval=-bound, maxval=bound)
    fc_b = jax.random.uniform(kb, (2 * C,), dtype=jnp.float32,
                              minval=-bound, maxval=bound)

    ref = adain_reference(x, s, fc_w, fc_b)

    # Default (single-pass, lane-dense streaming) path.
    out = jax.block_until_ready(adain_forward(x, s, fc_w, fc_b))
    assert out.shape == (N, C, H, W)
    assert jnp.allclose(out, ref, atol=1e-4, rtol=1e-4), "single-pass mismatch"

    # Exercise the large-HW two-pass path by forcing a tiny per-step budget.
    out2 = jax.block_until_ready(
        adain_forward(x, s, fc_w, fc_b, step_vmem_budget=32 * 1024))
    assert jnp.allclose(out2, ref, atol=1e-4, rtol=1e-4), "two-pass mismatch"

    print("KERNEL_OK")
</pallas_src>

<mosaic_0001>
module attributes {stable_mosaic.version = 11 : i64} {
  func.func @_adain_kernel(%arg0: i32, %arg1: memref<8x2xf32, #tpu.memory_space<vmem>>, %arg2: memref<8x256xf32, #tpu.memory_space<vmem>>, %arg3: memref<8x256xf32, #tpu.memory_space<vmem>>) attributes {dimension_semantics = [#tpu.dimension_semantics<parallel>], iteration_bounds = array<i64: 1>, scalar_prefetch = 0 : i64, scratch_operands = 0 : i64, tpu.core_type = #tpu.core_type<tc>, window_params = [{transform_indices = @transform_0, window_bounds = array<i64: 8, 2>}, {transform_indices = @transform_1, window_bounds = array<i64: 8, 256>}, {transform_indices = @transform_2, window_bounds = array<i64: 8, 256>}]} {
    %c0 = arith.constant 0 : index
    %c0_0 = arith.constant 0 : index
    %0 = vector.load %arg2[%c0, %c0_0] : memref<8x256xf32, #tpu.memory_space<vmem>>, vector<8x256xf32>
    %cst = arith.constant dense<0.000000e+00> : vector<8xf32>
    %1 = vector.multi_reduction <add>, %0, %cst [1] : vector<8x256xf32> to vector<8xf32>
    %2 = vector.shape_cast %1 : vector<8xf32> to vector<8x1xf32>
    %cst_1 = arith.constant 3.906250e-03 : f32
    %3 = vector.broadcast %cst_1 : f32 to vector<8x1xf32>
    %4 = arith.mulf %2, %3 : vector<8x1xf32>
    %c0_2 = arith.constant 0 : index
    %c0_3 = arith.constant 0 : index
    %5 = vector.load %arg2[%c0_2, %c0_3] : memref<8x256xf32, #tpu.memory_space<vmem>>, vector<8x256xf32>
    %6 = vector.broadcast %4 : vector<8x1xf32> to vector<8x256xf32>
    %7 = arith.subf %5, %6 : vector<8x256xf32>
    %8 = arith.mulf %7, %7 : vector<8x256xf32>
    %cst_4 = arith.constant dense<0.000000e+00> : vector<8xf32>
    %9 = vector.multi_reduction <add>, %8, %cst_4 [1] : vector<8x256xf32> to vector<8xf32>
    %10 = vector.shape_cast %9 : vector<8xf32> to vector<8x1xf32>
    %cst_5 = arith.constant 3.906250e-03 : f32
    %11 = vector.broadcast %cst_5 : f32 to vector<8x1xf32>
    %12 = arith.mulf %10, %11 : vector<8x1xf32>
    %cst_6 = arith.constant 9.99999974E-6 : f32
    %13 = vector.broadcast %cst_6 : f32 to vector<8x1xf32>
    %14 = arith.addf %12, %13 : vector<8x1xf32>
    %15 = math.rsqrt %14 : vector<8x1xf32>
    %c0_7 = arith.constant 0 : index
    %c0_8 = arith.constant 0 : index
    %16 = vector.load %arg1[%c0_7, %c0_8] : memref<8x2xf32, #tpu.memory_space<vmem>>, vector<8x2xf32>
    %17 = vector.extract_strided_slice %16 {offsets = [0, 0], sizes = [8, 1], strides = [1, 1]} : vector<8x2xf32> to vector<8x1xf32>
    %cst_9 = arith.constant 1.000000e+00 : f32
    %18 = vector.broadcast %cst_9 : f32 to vector<8x1xf32>
    %19 = arith.addf %18, %17 : vector<8x1xf32>
    %20 = arith.mulf %19, %15 : vector<8x1xf32>
    %21 = vector.broadcast %20 : vector<8x1xf32> to vector<8x256xf32>
    %22 = arith.mulf %7, %21 : vector<8x256xf32>
    %23 = vector.extract_strided_slice %16 {offsets = [0, 1], sizes = [8, 1], strides = [1, 1]} : vector<8x2xf32> to vector<8x1xf32>
    %24 = vector.broadcast %23 : vector<8x1xf32> to vector<8x256xf32>
    %25 = arith.addf %22, %24 : vector<8x256xf32>
    %c0_10 = arith.constant 0 : index
    %c0_11 = arith.constant 0 : index
    %26 = vector.load %arg3[%c0_10, %c0_11] : memref<8x256xf32, #tpu.memory_space<vmem>>, vector<8x256xf32>
    tpu.vector_store %arg3[%c0_10, %c0_11], %25 {strides = array<i32>} : memref<8x256xf32, #tpu.memory_space<vmem>>, vector<8x256xf32>,
    return
  }
  func.func @transform_0(%arg0: i32) -> (i32, i32) {
    %c0_i32 = arith.constant 0 : i32
    %c0_i32_0 = arith.constant 0 : i32
    return %arg0, %c0_i32 : i32, i32
  }
  func.func @transform_1(%arg0: i32) -> (i32, i32) {
    %c0_i32 = arith.constant 0 : i32
    %c0_i32_0 = arith.constant 0 : i32
    return %arg0, %c0_i32 : i32, i32
  }
  func.func @transform_2(%arg0: i32) -> (i32, i32) {
    %c0_i32 = arith.constant 0 : i32
    %c0_i32_0 = arith.constant 0 : i32
    return %arg0, %c0_i32 : i32, i32
  }
}

</mosaic_0001>

<llo_original>
// kernel: tpu_custom_call.1
$region0: #{tpu_custom_call.1}
  #allocation0 [shape = 'u32[]', space=smem, size = 0x4, offset = 0x4, fixed_abs, tag = 'smem constant byte address 0x4 - core index']
  #allocation1 [shape = 'u32[144,128]{1,0:T(1,128)}', space=vmem, size = 0x12000, scoped, tag = 'internal scratch']
  %s0 = inlined_call_operand.vmem [shape: f32[8,2], index: 0, kind: input, shape index: {}]
  %s1 = inlined_call_operand.hbm [shape: f32[8,256], index: 1, kind: input, shape index: {}]
  %s2 = inlined_call_operand.hbm [shape: f32[8,256], index: 2, kind: output, shape index: {}]
  %s3 = sld [smem:[#allocation0]]
  $region22: #{tpu_custom_call.1} parent=0
    _
  %s5 = ssub.s32 1, %s3
  %s6 = scalar_select 0, %s5, %s3
  $region1: #{tpu_custom_call.1} parent=0
    #allocation2 [shape = 'u8[8192]{0}', space=vmem, size = 0x2000, scoped, tag = 'input window, operand 1, single buffered']
    #allocation3 [shape = 's32[1]{0}', space=sflag, size = 0x4, scoped, tag = 'scoped memory for tpu_custom_call.1']
    #allocation4 [shape = 's32[1]{0}', space=sflag, size = 0x4, scoped, tag = 'scoped memory for tpu_custom_call.1']
    #allocation5 [shape = 'u8[8192]{0}', space=vmem, size = 0x2000, scoped, tag = 'output window, operand 0, single buffered']
    %7 = vsyncpa [#allocation3], 0
    %8 = vsyncpa [#allocation4], 0
    // Predicated region
    $region2: #{tpu_custom_call.1} parent=1 // pred_check
      _
    $region3: #{tpu_custom_call.1} parent=1 // pred_check_branch
      %10 = sbr.rel (0) target = $region5
    $region4: #{tpu_custom_call.1} parent=1 // pred_region
      _
    $region5: #{tpu_custom_call.1} parent=1 // pred_fallthru
      _
    // Predicated region
    $region6: #{tpu_custom_call.1} parent=1 // pred_check
      _
    $region7: #{tpu_custom_call.1} parent=1 // pred_check_branch
      %12 = sbr.rel (0) target = $region9
    $region8: #{tpu_custom_call.1} parent=1 // pred_region
      %s14 = ssub.s32 256, 256
      %15 = vsyncadd [#allocation3], %s14
      %s17 = sshll.u32 [#allocation2], 4
      %s18 = int_to_ptr.vmem [resolvable:$true] %s17
      %20 = dma.hbm_to_vmem [thread:$0]  %s1, 256, %s18, [#allocation3]
    $region9: #{tpu_custom_call.1} parent=1 // pred_fallthru
      _
    // Predicated region
    $region10: #{tpu_custom_call.1} parent=1 // pred_check
      _
    $region11: #{tpu_custom_call.1} parent=1 // pred_check_branch
      %22 = sbr.rel (0) target = $region13
    $region12: #{tpu_custom_call.1} parent=1 // pred_region
      %23 = dma.done [#allocation3], 256
    $region13: #{tpu_custom_call.1} parent=1 // pred_fallthru
      _
    %v24 = vld [vmem:[#allocation2] sm:$0xff]
    %v25 = vld [vmem:[#allocation2 + $0x8] sm:$0xff]
    %v26 = vadd.f32 %v24, %v25
    %27 = vadd.xlane.f32.xlu0 %v26
    %v28 = vpop.xlane.xlu0 %27
    %v29 = vmul.f32 %v28, 0.00390625
    %v30 = vsub.f32 %v24, %v29
    %v31 = vsub.f32 %v25, %v29
    %v32 = vmul.f32 %v30, %v30
    %v33 = vmul.f32 %v31, %v31
    %v34 = vadd.f32 %v32, %v33
    %35 = vadd.xlane.f32.xlu0 %v34
    %v36 = vpop.xlane.xlu0 %35
    %v37 = vmul.f32 %v36, 0.00390625
    %v38 = vadd.f32 %v37, 1e-05
    %v39 = vrsqrt.pop %v38
    %v40 = vld [vmem:[%s0] sm:$0xff]
    %v41 = vadd.f32 %v40, 1.0
    %v42 = vmul.f32 %v41, %v39
    %44 = vset.pattern.permute.xlu0 0
    %45 = vperm.xlu0 %44, %v42
    %v46 = vpop.permute.xlu0 %45
    %v48 = vmul.f32 %v30, %v46
    %v49 = vmul.f32 %v31, %v46
    %51 = vset.pattern.permute.xlu0 1
    %52 = vperm.xlu0 %51, %v40
    %v53 = vpop.permute.xlu0 %52
    %v55 = vadd.f32 %v48, %v53
    %v56 = vadd.f32 %v49, %v53
    %57 = vst [vmem:[#allocation5] sm:$0xff] %v55
    %58 = vst [vmem:[#allocation5 + $0x8] sm:$0xff] %v56
    // Predicated region
    $region14: #{tpu_custom_call.1} parent=1 // pred_check
      _
    $region15: #{tpu_custom_call.1} parent=1 // pred_check_branch
      %60 = sbr.rel (0) target = $region17
    $region16: #{tpu_custom_call.1} parent=1 // pred_region
      %s62 = ssub.s32 256, 256
      %63 = vsyncadd [#allocation4], %s62
      %s65 = sshll.u32 [#allocation5], 4
      %s66 = int_to_ptr.vmem [resolvable:$true] %s65
      %68 = dma.vmem_to_hbm [thread:$0]  %s66, 256, %s2, [#allocation4]
    $region17: #{tpu_custom_call.1} parent=1 // pred_fallthru
      _
    // Predicated region
    $region18: #{tpu_custom_call.1} parent=1 // pred_check
      _
    $region19: #{tpu_custom_call.1} parent=1 // pred_check_branch
      %70 = sbr.rel (0) target = $region21
    $region20: #{tpu_custom_call.1} parent=1 // pred_region
      %71 = dma.done [#allocation4], 256
    $region21: #{tpu_custom_call.1} parent=1 // pred_fallthru
      _
    %72 = vsyncpa [#allocation3], 1
    %73 = vsyncpa [#allocation4], 1

</llo_original>
